<compile_context>
chip_gen: v7x
topology: tpu7x:2x2x1
jax: 0.10.0
libtpu: 0.0.40
codegen_flags: <defaults>
</compile_context>

<pallas_src>
import math

import jax
import jax.numpy as jnp
from jax.experimental import pallas as pl
from jax.experimental.pallas import tpu as pltpu

_LANE = 128
_MAX_LANE_WIDTH = 8192          # width cap for the 2D view (perf review: widen / cap loosely)
_CHUNK_BYTES_TARGET = 4 << 20   # ~4 MiB per DMA chunk: amortizes issue cost even at v7x's 3.2 TB/s
_MAX_DMA_CHUNKS = 8             # a handful of concurrent DMAs is plenty to saturate HBM


def _pick_2d_view(total, B, n_in, itemsize):
    """Factor `total` into an (R, C) view used only so the DMA can be row-chunked."""
    sub = max(8, 32 // itemsize)  # sublane tile: 8 f32, 16 bf16, 32 int8
    if total % _LANE == 0:
        c = _LANE
        while c * 2 <= _MAX_LANE_WIDTH and total % (c * 2) == 0:
            c *= 2
        r = total // c
        align = sub if (r % sub == 0) else 1
        return r, c, align
    # Ragged total: the natural (B, n_in) view.  An HBM->HBM DMA does not care
    # about lanes/sublanes, so no padding or masked stores are involved.
    return B, n_in, 1


def _chunk_rows(r, row_bytes, align):
    """Static (start, size) row chunks: few, large, tile-aligned DMAs."""
    total_bytes = r * row_bytes
    n = max(1, min(_MAX_DMA_CHUNKS, total_bytes // _CHUNK_BYTES_TARGET))
    n = min(n, max(1, r // align))
    if n <= 1:
        return [(0, r)]
    per = -(-r // n)                       # ceil(r / n)
    per = -(-per // align) * align         # round chunk size up to the row-tile multiple
    chunks = []
    start = 0
    while start < r:
        size = min(per, r - start)
        chunks.append((start, size))
        start += size
    return chunks


def _make_dma_copy_kernel(chunks, full_rows):
    """HBM->HBM identity copy via chunked async DMAs (no VMEM staging)."""
    whole = len(chunks) == 1 and chunks[0] == (0, full_rows)

    def kernel(x_hbm, o_hbm, sems):
        if whole:
            copies = [pltpu.make_async_copy(x_hbm, o_hbm, sems.at[0])]
        else:
            copies = [
                pltpu.make_async_copy(
                    x_hbm.at[pl.ds(start, size), :],
                    o_hbm.at[pl.ds(start, size), :],
                    sems.at[i],
                )
                for i, (start, size) in enumerate(chunks)
            ]
        # Issue every chunk, then wait for all: the DMA engines overlap freely.
        for cp in copies:
            cp.start()
        for cp in copies:
            cp.wait()

    return kernel


def pallas_reshape(x, target_shape):
    """Reproduces Reshape(*target_shape).forward(x): (B, ...) -> (B, *target_shape)."""
    B = x.shape[0]
    n_in = math.prod(x.shape[1:])
    n_out = math.prod(target_shape) if len(target_shape) > 0 else 1
    if n_in != n_out:
        raise ValueError(
            f"cannot reshape array of size {B * n_in} into shape "
            f"({B}, {', '.join(map(str, target_shape))})"
        )

    out_shape = (B, *target_shape)
    total = B * n_in
    if total == 0:
        return x.reshape(out_shape)

    itemsize = jnp.dtype(x.dtype).itemsize
    r, c, align = _pick_2d_view(total, B, n_in, itemsize)
    chunks = _chunk_rows(r, c * itemsize, align)

    x2d = x.reshape(r, c)
    out2d = pl.pallas_call(
        _make_dma_copy_kernel(chunks, r),
        out_shape=jax.ShapeDtypeStruct((r, c), x2d.dtype),
        in_specs=[pl.BlockSpec(memory_space=pl.ANY)],
        out_specs=pl.BlockSpec(memory_space=pl.ANY),
        scratch_shapes=[pltpu.SemaphoreType.DMA((len(chunks),))],
    )(x2d)
    return out2d.reshape(out_shape)


if __name__ == "__main__":
    key = jax.random.PRNGKey(0)

    # Case 1: module-sized input in NCHW convention, Reshape(16, 64).
    x = jax.random.normal(key, (2, 4, 16, 16), dtype=jnp.float32)
    target_shape = (16, 64)
    ref = x.reshape(x.shape[0], *target_shape)
    out = jax.block_until_ready(pallas_reshape(x, target_shape))
    assert out.shape == (2, 16, 64), out.shape
    assert out.dtype == x.dtype
    assert jnp.array_equal(out, ref), "Pallas reshape mismatch vs reference (case 1)"

    # Case 2: larger lane-dense input, single full-array DMA.
    x2 = jax.random.normal(jax.random.PRNGKey(0), (2, 64, 32, 32), dtype=jnp.float32)
    ref2 = x2.reshape(x2.shape[0], 64 * 32 * 32)
    out2 = jax.block_until_ready(pallas_reshape(x2, (64 * 32 * 32,)))
    assert out2.shape == (2, 64 * 32 * 32), out2.shape
    assert jnp.array_equal(out2, ref2), "Pallas reshape mismatch vs reference (case 2)"

    # Case 3: 8 MiB input exercising the multi-chunk (start-all/wait-all) DMA path.
    x3 = jax.random.normal(jax.random.PRNGKey(0), (2, 1024, 1024), dtype=jnp.float32)
    ref3 = x3.reshape(x3.shape[0], 32, 32768)
    out3 = jax.block_until_ready(pallas_reshape(x3, (32, 32768)))
    assert out3.shape == (2, 32, 32768), out3.shape
    assert jnp.array_equal(out3, ref3), "Pallas reshape mismatch vs reference (case 3)"

    # Case 4: ragged total (not a multiple of 128), exercises the (B, n_in) view.
    x4 = jax.random.normal(jax.random.PRNGKey(0), (2, 3, 5, 7), dtype=jnp.float32)
    ref4 = x4.reshape(x4.shape[0], 3, 35)
    out4 = jax.block_until_ready(pallas_reshape(x4, (3, 35)))
    assert out4.shape == (2, 3, 35), out4.shape
    assert jnp.array_equal(out4, ref4), "Pallas reshape mismatch vs reference (case 4)"

    print("KERNEL_OK")
</pallas_src>

<mosaic_0001>
module attributes {stable_mosaic.version = 11 : i64} {
  func.func @kernel(%arg0: memref<1x2048xf32, #tpu.memory_space<any>>, %arg1: memref<1x2048xf32, #tpu.memory_space<any>>, %arg2: memref<1x!tpu.dma_semaphore, #tpu.memory_space<semaphore_mem>>) attributes {dimension_semantics = [], scalar_prefetch = 0 : i64, scratch_operands = 1 : i64, tpu.core_type = #tpu.core_type<tc>} {
    %c0_i32 = arith.constant 0 : i32
    %0 = tpu.memref_slice %arg2[%c0_i32] : memref<1x!tpu.dma_semaphore, #tpu.memory_space<semaphore_mem>> -> memref<1x!tpu.dma_semaphore, #tpu.memory_space<semaphore_mem>>
    %1 = tpu.memref_squeeze %0 : memref<1x!tpu.dma_semaphore, #tpu.memory_space<semaphore_mem>> -> memref<!tpu.dma_semaphore, #tpu.memory_space<semaphore_mem>>
    tpu.enqueue_dma source(%arg0 : memref<1x2048xf32, #tpu.memory_space<any>>) target(%arg1 : memref<1x2048xf32, #tpu.memory_space<any>>) target_semaphore(%1 : memref<!tpu.dma_semaphore, #tpu.memory_space<semaphore_mem>>)
    %c0_i32_0 = arith.constant 0 : i32
    %2 = tpu.memref_slice %arg2[%c0_i32_0] : memref<1x!tpu.dma_semaphore, #tpu.memory_space<semaphore_mem>> -> memref<1x!tpu.dma_semaphore, #tpu.memory_space<semaphore_mem>>
    %3 = tpu.memref_squeeze %2 : memref<1x!tpu.dma_semaphore, #tpu.memory_space<semaphore_mem>> -> memref<!tpu.dma_semaphore, #tpu.memory_space<semaphore_mem>>
    tpu.wait_dma2 semaphore(%3 : memref<!tpu.dma_semaphore, #tpu.memory_space<semaphore_mem>>) src(%arg0 : memref<1x2048xf32, #tpu.memory_space<any>>) dst(%arg1 : memref<1x2048xf32, #tpu.memory_space<any>>)
    return
  }
}

</mosaic_0001>

<llo_original>
// kernel: tpu_custom_call.1
$region0: #{tpu_custom_call.1}
  #allocation0 [shape = 'u32[]', space=smem, size = 0x4, offset = 0x4, fixed_abs, tag = 'smem constant byte address 0x4 - core index']
  #allocation1 [shape = 'u32[144,128]{1,0:T(1,128)}', space=vmem, size = 0x12000, scoped, tag = 'internal scratch']
  #allocation2 [shape = 's32[1]{0}', space=sflag, size = 0x4, scoped, tag = 'scratch operand']
  #allocation3 [shape = 's32[]', space=sflag, size = 0x4, offset = 0, fixed_abs, tag = 'sflag constant byte address 0x0 - dummy sync flag']
  #allocation4 [shape = 'u32[0]{0}', space=smem, size = 0, offset = 0, fixed_abs, tag = 'smem constant byte address 0x0 - null']
  %s0 = inlined_call_operand.hbm [shape: f32[1,2048], index: 0, kind: input, shape index: {}]
  %s1 = inlined_call_operand.hbm [shape: f32[1,2048], index: 1, kind: output, shape index: {}]
  %s2 = sld [smem:[#allocation0]]
  $region2: #{tpu_custom_call.1} parent=0
    _
  %s4 = ssub.s32 1, %s2
  %s5 = scalar_select 0, %s4, %s2
  %s7 = sshll.u32 1, 14
  %s8 = sxor.u32 4294967295, %s7
  %s11 = sshll.u32 3, 24
  %s12 = sxor.u32 4294967295, %s11
  %s13 = sand.u32 0, %s12
  %s15 = sor.u32 %s13, 0
  %18 = dma.general %s0, 256, %s1, [#allocation2], [#allocation3], [#allocation4], %s15, 0
  %s19 = smul.u32 1, 16
  %s20 = sshll.u32 %s19, 4
  %21 = dma.done [#allocation2], %s20
  %22 = vsyncmov [#allocation2]
  %s23 = vpop.sfrf %22
  %p24 = scmp.eq.s32.totalorder %s23, 0
  %p25 = pneg %p24
  %27 = shalt.err (%p25)

</llo_original>
